<compile_context>
chip_gen: v5e
topology: v5e:2x2
jax: 0.10.0
libtpu: 0.0.40
codegen_flags: <defaults>
</compile_context>

<pallas_src>
import math

import jax
import jax.numpy as jnp
from jax import lax
from jax.experimental import pallas as pl
from jax.experimental.pallas import tpu as pltpu

_PREC = lax.Precision.HIGHEST  # keep f32 dots at f32 accuracy on the MXU


# ----------------------------------------------------------------------------
# Pallas kernel
# ----------------------------------------------------------------------------
def _make_scorepool_kernel(multiplier, g):
    def kernel(*refs):
        if g > 1:
            x_ref, wbd_ref, wbdt_ref, e_ref, score_ref, xs_ref = refs
        else:
            x_ref, wbd_ref, wbdt_ref, score_ref, xs_ref = refs

        x = x_ref[...]          # (TN, cols)  native input dtype (no upcast)
        wbd = wbd_ref[...]      # (cols, g)   pre-normalized block-diag weight
        wbdt = wbdt_ref[...]    # (g, cols)   its transpose

        # Per-node row-dot on the (otherwise idle) MXU, f32 accumulation.
        s_col = jnp.tanh(lax.dot_general(
            x, wbd, (((1,), (0,)), ((), ())),
            preferred_element_type=jnp.float32, precision=_PREC))      # (TN, g)

        # Lane-dense score output: compute directly in (g, TN) orientation
        # (A @ B^T form) so the store is full-lane instead of a masked column.
        s_row = jnp.tanh(lax.dot_general(
            wbdt, x, (((1,), (1,)), ((), ())),
            preferred_element_type=jnp.float32, precision=_PREC))      # (g, TN)
        score_ref[...] = s_row[None]                                   # (1, g, TN)

        s2 = s_col * multiplier if multiplier != 1.0 else s_col        # f32
        if g > 1:
            # Broadcast each of the g per-row scores across its C-lane segment
            # with a tiny 0/1 matrix on the MXU (XLU stays untouched).
            scale = lax.dot_general(
                s2, e_ref[...], (((1,), (0,)), ((), ())),
                preferred_element_type=jnp.float32, precision=_PREC)   # (TN, cols)
        else:
            scale = s2                                                 # (TN, 1)

        # f32 multiply (matches reference promotion), single downcast at store.
        xs_ref[...] = (x * scale).astype(xs_ref.dtype)

    return kernel


# ----------------------------------------------------------------------------
# Tiling / VMEM policy
# ----------------------------------------------------------------------------
def _vmem_policy():
    phys = 64 * 1024 * 1024                       # conservative default (v7x)
    try:
        info = pltpu.get_tpu_info()
        phys = int(getattr(info, "vmem_capacity_bytes", phys))
    except Exception:
        pass
    limit = min(int(phys * 3) // 4, 96 * 1024 * 1024)   # scoped VMEM limit
    budget = (limit * 5) // 8                            # block-sizing budget
    return budget, limit


def _num_tensorcores():
    try:
        kind = jax.devices()[0].device_kind.lower()
        if ("v7" in kind) or ("7x" in kind) or ("v4" in kind) or ("v5p" in kind):
            return 2
    except Exception:
        pass
    return 1


def _choose_tile_rows(n_rows, cols, itemsize, vmem_budget, n_cores):
    row_mult = {1: 32, 2: 16}.get(itemsize, 8)
    io_row = cols * itemsize
    # Per pipelined row: x in (2 bufs) + x_scaled out (2 bufs) + f32 temps.
    per_row = 4 * io_row + 8 * cols + 64
    tile = max(row_mult, vmem_budget // per_row)
    if n_cores > 1:
        tile = min(tile, -(-n_rows // n_cores))   # keep >= n_cores grid tiles
    if tile >= n_rows:
        return n_rows                             # single full block (grid == 1)
    return max(row_mult, (tile // row_mult) * row_mult)


# ----------------------------------------------------------------------------
# Wrapper: score + row-scaled features
# ----------------------------------------------------------------------------
def scorepool_score_and_scale(x, weight, multiplier=1.0, tile_rows=None):
    """Returns (score (N,) f32, x_scaled (N, C) = multiplier * x * score[:,None])."""
    N, C = x.shape
    dtype = x.dtype
    itemsize = jnp.dtype(dtype).itemsize

    # Lane-dense folding: pack g nodes per 128-lane row (free, row-major reshape).
    g = 128 // C if (C < 128 and 128 % C == 0) else 1
    if g > 1 and N % g != 0:
        g = 1  # TODO(synk): handle a <g-row tail separately to keep the fold.
    cols = g * C
    n_rows = N // g
    x_f = x.reshape(n_rows, cols) if g > 1 else x

    # Weight norm hoisted out of the kernel.
    w32 = weight.astype(jnp.float32).reshape(-1)            # (C,)
    w_n = w32 * lax.rsqrt(jnp.sum(w32 * w32))

    if g > 1:
        eye = jnp.eye(g, dtype=jnp.float32)
        wbd = (eye[:, None, :] * w_n[None, :, None]).reshape(cols, g)
        e_mat = jnp.repeat(eye, C, axis=1)                   # (g, cols) 0/1
    else:
        wbd = w_n.reshape(C, 1)
        e_mat = None
    wbd = wbd.astype(dtype)          # feed MXU in the input dtype
    wbd_t = wbd.T

    vmem_budget, vmem_limit = _vmem_policy()
    if tile_rows is None:
        tile_rows = _choose_tile_rows(n_rows, cols, itemsize, vmem_budget,
                                      _num_tensorcores())
    grid = pl.cdiv(n_rows, tile_rows)   # ragged last block: no pad copy of x

    in_specs = [
        pl.BlockSpec((tile_rows, cols), lambda i: (i, 0)),
        pl.BlockSpec((cols, g), lambda i: (0, 0)),
        pl.BlockSpec((g, cols), lambda i: (0, 0)),
    ]
    operands = [x_f, wbd, wbd_t]
    if g > 1:
        in_specs.append(pl.BlockSpec((g, cols), lambda i: (0, 0)))
        operands.append(e_mat)

    score_t, xs_f = pl.pallas_call(
        _make_scorepool_kernel(float(multiplier), g),
        out_shape=(
            jax.ShapeDtypeStruct((grid, g, tile_rows), jnp.float32),
            jax.ShapeDtypeStruct((n_rows, cols), dtype),
        ),
        grid_spec=pltpu.PrefetchScalarGridSpec(
            num_scalar_prefetch=0,
            grid=(grid,),
            in_specs=in_specs,
            out_specs=[
                pl.BlockSpec((1, g, tile_rows), lambda i: (i, 0, 0)),
                pl.BlockSpec((tile_rows, cols), lambda i: (i, 0)),
            ],
        ),
        compiler_params=pltpu.CompilerParams(
            dimension_semantics=("parallel",),
            vmem_limit_bytes=int(vmem_limit),
        ),
    )(*operands)

    # (grid, g, tile) -> node order; rows >= N (ragged-block garbage) sliced off.
    score = jnp.transpose(score_t, (0, 2, 1)).reshape(-1)[:N]
    x_scaled = xs_f.reshape(-1, C) if g > 1 else xs_f
    return score, x_scaled


# ----------------------------------------------------------------------------
# Top-k glue (on-device top_k + mask; ragged output needs one tiny host sync)
# ----------------------------------------------------------------------------
def topk_jax(score_abs, ratio, batch, num_graphs):
    """JAX port of torch_geometric's dense top-k node selection.

    Selection (top_k, masking, gathers) stays on device; a single host sync of
    the per-graph node counts provides the static shapes (kmax, total) that a
    ragged result inherently needs.
    Note: ties are broken by lowest index (lax.top_k); torch.sort's tie order
    may differ on exact ties.
    """
    N = score_abs.shape[0]
    B = int(num_graphs)
    num_nodes = jax.ops.segment_sum(jnp.ones((N,), jnp.int32), batch,
                                    num_segments=B)
    # TODO(synk): one host sync for the ragged output shape is unavoidable to
    # match the reference's variable-length perm exactly.
    nn_host = [int(v) for v in jax.device_get(num_nodes)]
    max_nn = max(nn_host)
    if isinstance(ratio, int):
        k_host = [min(ratio, n) for n in nn_host]
    else:
        k_host = [int(math.ceil(ratio * float(n))) for n in nn_host]
    kmax = min(max(k_host), max_nn)
    total = sum(k_host)

    cum = jnp.concatenate(
        [jnp.zeros((1,), jnp.int32), jnp.cumsum(num_nodes)[:-1].astype(jnp.int32)])
    index = (jnp.arange(N, dtype=jnp.int32) - cum[batch]
             + batch.astype(jnp.int32) * max_nn)
    dense = jnp.full((B * max_nn,), jnp.finfo(score_abs.dtype).min, score_abs.dtype)
    dense = dense.at[index].set(score_abs).reshape(B, max_nn)

    _, idx = lax.top_k(dense, kmax)                         # (B, kmax) on device
    perm_global = idx.astype(jnp.int32) + cum[:, None]
    keep = (jnp.arange(kmax, dtype=jnp.int32)[None, :]
            < jnp.asarray(k_host, dtype=jnp.int32)[:, None])
    sel = jnp.nonzero(keep.reshape(-1), size=total)[0]
    return perm_global.reshape(-1)[sel]


def scorepool_forward(x, weight, batch, num_graphs, ratio=0.5, multiplier=1.0):
    """Full Scorepool.forward (edge_attr=None, min_score=None path).

    Returns (x_out, batch_out, perm, score, score[perm])."""
    score, x_scaled = scorepool_score_and_scale(x, weight, multiplier)
    perm = topk_jax(jnp.abs(score), ratio, batch, num_graphs)
    x_out = x_scaled[perm]        # == multiplier * x[perm] * score[perm][:, None]
    return x_out, batch[perm], perm, score, score[perm]


def _reference_forward(x, weight, batch, num_graphs, ratio=0.5, multiplier=1.0):
    """Pure-JAX reference for the correctness check."""
    score = jnp.sum(x * weight, axis=-1) / jnp.linalg.norm(weight)
    score = jnp.tanh(score)
    perm = topk_jax(jnp.abs(score), ratio, batch, num_graphs)
    x_out = multiplier * x[perm] * score[perm][:, None]
    return x_out, batch[perm], perm, score, score[perm]


# TODO(synk): min_score (per-graph softmax score) and the edge_attr/filter_adj
# branch of the PyTorch module are not implemented (default forward path only).

if __name__ == "__main__":
    key = jax.random.PRNGKey(0)
    k_x, k_w = jax.random.split(key)

    in_channels = 32
    nodes_per_graph = 8
    num_graphs = 2
    N = nodes_per_graph * num_graphs                       # 16 nodes total

    x = jax.random.normal(k_x, (N, in_channels), dtype=jnp.float32)
    # Parameter(torch.Tensor(1, in_channels)) with uniform(-1/sqrt(C), 1/sqrt(C))
    bound = 1.0 / math.sqrt(in_channels)
    weight = jax.random.uniform(k_w, (1, in_channels),
                                minval=-bound, maxval=bound, dtype=jnp.float32)
    batch = jnp.repeat(jnp.arange(num_graphs, dtype=jnp.int32), nodes_per_graph)

    out = scorepool_forward(x, weight, batch, num_graphs, ratio=0.5, multiplier=1.0)
    jax.block_until_ready(out)

    ref = _reference_forward(x, weight, batch, num_graphs, ratio=0.5, multiplier=1.0)
    assert jnp.allclose(out[0], ref[0], atol=1e-5, rtol=1e-5)
    assert jnp.array_equal(out[2], ref[2])
    assert jnp.allclose(out[3], ref[3], atol=1e-5, rtol=1e-5)
    assert jnp.allclose(out[4], ref[4], atol=1e-5, rtol=1e-5)

    print("KERNEL_OK")
</pallas_src>

<mosaic_0001>
module attributes {stable_mosaic.version = 11 : i64} {
  func.func @kernel(%arg0: i32, %arg1: memref<4x128xf32, #tpu.memory_space<vmem>>, %arg2: memref<128x4xf32, #tpu.memory_space<vmem>>, %arg3: memref<4x128xf32, #tpu.memory_space<vmem>>, %arg4: memref<4x128xf32, #tpu.memory_space<vmem>>, %arg5: memref<1x4x4xf32, #tpu.memory_space<vmem>>, %arg6: memref<4x128xf32, #tpu.memory_space<vmem>>) attributes {dimension_semantics = [#tpu.dimension_semantics<parallel>], iteration_bounds = array<i64: 1>, scalar_prefetch = 0 : i64, scratch_operands = 0 : i64, tpu.core_type = #tpu.core_type<tc>, window_params = [{transform_indices = @transform_0, window_bounds = array<i64: 4, 128>}, {pipeline_mode = #tpu.pipeline_mode<synchronous>, transform_indices = @transform_1, window_bounds = array<i64: 128, 4>}, {pipeline_mode = #tpu.pipeline_mode<synchronous>, transform_indices = @transform_2, window_bounds = array<i64: 4, 128>}, {pipeline_mode = #tpu.pipeline_mode<synchronous>, transform_indices = @transform_3, window_bounds = array<i64: 4, 128>}, {transform_indices = @transform_4, window_bounds = array<i64: 1, 4, 4>}, {transform_indices = @transform_5, window_bounds = array<i64: 4, 128>}]} {
    %c0 = arith.constant 0 : index
    %c0_0 = arith.constant 0 : index
    %0 = vector.load %arg1[%c0, %c0_0] : memref<4x128xf32, #tpu.memory_space<vmem>>, vector<4x128xf32>
    %c0_1 = arith.constant 0 : index
    %c0_2 = arith.constant 0 : index
    %1 = vector.load %arg2[%c0_1, %c0_2] : memref<128x4xf32, #tpu.memory_space<vmem>>, vector<128x4xf32>
    %c0_3 = arith.constant 0 : index
    %c0_4 = arith.constant 0 : index
    %2 = vector.load %arg3[%c0_3, %c0_4] : memref<4x128xf32, #tpu.memory_space<vmem>>, vector<4x128xf32>
    %cst = arith.constant dense<0.000000e+00> : vector<4x4xf32>
    %3 = tpu.matmul %0, %1, %cst {dimension_numbers = #tpu.dot_dimension_numbers<[1], [0], [0], [1], [0, 0, 1, 1], [], []>, precision = #tpu.contract_precision<fp32>} : vector<4x128xf32>, vector<128x4xf32>, vector<4x4xf32> -> vector<4x4xf32>
    %4 = math.tanh %3 : vector<4x4xf32>
    %cst_5 = arith.constant dense<0.000000e+00> : vector<4x4xf32>
    %5 = tpu.matmul %2, %0, %cst_5 {dimension_numbers = #tpu.dot_dimension_numbers<[1], [1], [0], [0], [0, 0, 1, 0], [], []>, precision = #tpu.contract_precision<fp32>} : vector<4x128xf32>, vector<4x128xf32>, vector<4x4xf32> -> vector<4x4xf32>
    %6 = math.tanh %5 : vector<4x4xf32>
    %7 = vector.shape_cast %6 : vector<4x4xf32> to vector<1x4x4xf32>
    %c0_6 = arith.constant 0 : index
    %c0_7 = arith.constant 0 : index
    %c0_8 = arith.constant 0 : index
    %8 = vector.load %arg5[%c0_6, %c0_7, %c0_8] : memref<1x4x4xf32, #tpu.memory_space<vmem>>, vector<1x4x4xf32>
    tpu.vector_store %arg5[%c0_6, %c0_7, %c0_8], %7 {strides = array<i32>} : memref<1x4x4xf32, #tpu.memory_space<vmem>>, vector<1x4x4xf32>,
    %c0_9 = arith.constant 0 : index
    %c0_10 = arith.constant 0 : index
    %9 = vector.load %arg4[%c0_9, %c0_10] : memref<4x128xf32, #tpu.memory_space<vmem>>, vector<4x128xf32>
    %cst_11 = arith.constant dense<0.000000e+00> : vector<4x128xf32>
    %10 = tpu.matmul %4, %9, %cst_11 {dimension_numbers = #tpu.dot_dimension_numbers<[1], [0], [0], [1], [0, 0, 1, 1], [], []>, precision = #tpu.contract_precision<fp32>} : vector<4x4xf32>, vector<4x128xf32>, vector<4x128xf32> -> vector<4x128xf32>
    %11 = arith.mulf %0, %10 : vector<4x128xf32>
    %c0_12 = arith.constant 0 : index
    %c0_13 = arith.constant 0 : index
    %12 = vector.load %arg6[%c0_12, %c0_13] : memref<4x128xf32, #tpu.memory_space<vmem>>, vector<4x128xf32>
    tpu.vector_store %arg6[%c0_12, %c0_13], %11 {strides = array<i32>} : memref<4x128xf32, #tpu.memory_space<vmem>>, vector<4x128xf32>,
    return
  }
  func.func @transform_0(%arg0: i32) -> (i32, i32) {
    %c0_i32 = arith.constant 0 : i32
    %c0_i32_0 = arith.constant 0 : i32
    return %arg0, %c0_i32 : i32, i32
  }
  func.func @transform_1(%arg0: i32) -> (i32, i32) {
    %c0_i32 = arith.constant 0 : i32
    %c0_i32_0 = arith.constant 0 : i32
    %c0_i32_1 = arith.constant 0 : i32
    return %c0_i32, %c0_i32_0 : i32, i32
  }
  func.func @transform_2(%arg0: i32) -> (i32, i32) {
    %c0_i32 = arith.constant 0 : i32
    %c0_i32_0 = arith.constant 0 : i32
    %c0_i32_1 = arith.constant 0 : i32
    return %c0_i32, %c0_i32_0 : i32, i32
  }
  func.func @transform_3(%arg0: i32) -> (i32, i32) {
    %c0_i32 = arith.constant 0 : i32
    %c0_i32_0 = arith.constant 0 : i32
    %c0_i32_1 = arith.constant 0 : i32
    return %c0_i32, %c0_i32_0 : i32, i32
  }
  func.func @transform_4(%arg0: i32) -> (i32, i32, i32) {
    %c0_i32 = arith.constant 0 : i32
    %c0_i32_0 = arith.constant 0 : i32
    %c0_i32_1 = arith.constant 0 : i32
    return %arg0, %c0_i32, %c0_i32_0 : i32, i32, i32
  }
  func.func @transform_5(%arg0: i32) -> (i32, i32) {
    %c0_i32 = arith.constant 0 : i32
    %c0_i32_0 = arith.constant 0 : i32
    return %arg0, %c0_i32 : i32, i32
  }
}

</mosaic_0001>

<llo_original>
// kernel: tpu_custom_call.1
$region0: #{tpu_custom_call.1}
  #allocation0 [shape = 'u32[]', space=smem, size = 0x4, offset = 0x4, fixed_abs, tag = 'smem constant byte address 0x4 - core index']
  #allocation1 [shape = 'u32[72,128]{1,0:T(1,128)}', space=vmem, size = 0x9000, scoped, tag = 'internal scratch']
  %s0 = inlined_call_operand.vmem [shape: f32[4,128], index: 0, kind: input, shape index: {}]
  %s1 = inlined_call_operand.vmem [shape: f32[128,4], index: 1, kind: input, shape index: {}]
  %s2 = inlined_call_operand.vmem [shape: f32[4,128], index: 2, kind: input, shape index: {}]
  %s3 = inlined_call_operand.vmem [shape: f32[4,128], index: 3, kind: input, shape index: {}]
  %s4 = inlined_call_operand.hbm [shape: f32[1,4,4], index: 4, kind: output, shape index: {0}]
  %s5 = inlined_call_operand.hbm [shape: f32[4,128], index: 5, kind: output, shape index: {1}]
  %6 = xla_tuple %s4, %s5
  %s7 = sld [smem:[#allocation0]]
  $region34: #{tpu_custom_call.1} parent=0
    _
  %s9 = ssub.s32 1, %s7
  %s10 = scalar_select 0, %s9, %s7
  $region1: #{tpu_custom_call.1} parent=0
    #allocation2 [shape = 'u8[2048]{0}', space=vmem, size = 0x800, scoped, tag = 'output window, operand 0, single buffered']
    #allocation3 [shape = 's32[1]{0}', space=sflag, size = 0x4, scoped, tag = 'scoped memory for tpu_custom_call.1']
    #allocation4 [shape = 'u8[2048]{0}', space=vmem, size = 0x800, scoped, tag = 'output window, operand 1, single buffered']
    #allocation5 [shape = 's32[1]{0}', space=sflag, size = 0x4, scoped, tag = 'scoped memory for tpu_custom_call.1']
    %11 = vsyncpa [#allocation3], 0
    %12 = vsyncpa [#allocation5], 0
    // Predicated region
    $region2: #{tpu_custom_call.1} parent=1 // pred_check
      _
    $region3: #{tpu_custom_call.1} parent=1 // pred_check_branch
      %14 = sbr.rel (0) target = $region5
    $region4: #{tpu_custom_call.1} parent=1 // pred_region
      _
    $region5: #{tpu_custom_call.1} parent=1 // pred_fallthru
      _
    // Predicated region
    $region6: #{tpu_custom_call.1} parent=1 // pred_check
      _
    $region7: #{tpu_custom_call.1} parent=1 // pred_check_branch
      %16 = sbr.rel (0) target = $region9
    $region8: #{tpu_custom_call.1} parent=1 // pred_region
      _
    $region9: #{tpu_custom_call.1} parent=1 // pred_fallthru
      _
    // Predicated region
    $region10: #{tpu_custom_call.1} parent=1 // pred_check
      _
    $region11: #{tpu_custom_call.1} parent=1 // pred_check_branch
      %18 = sbr.rel (0) target = $region13
    $region12: #{tpu_custom_call.1} parent=1 // pred_region
      _
    $region13: #{tpu_custom_call.1} parent=1 // pred_fallthru
      _
    // Predicated region
    $region14: #{tpu_custom_call.1} parent=1 // pred_check
      _
    $region15: #{tpu_custom_call.1} parent=1 // pred_check_branch
      %20 = sbr.rel (0) target = $region17
    $region16: #{tpu_custom_call.1} parent=1 // pred_region
      _
    $region17: #{tpu_custom_call.1} parent=1 // pred_fallthru
      _
    %v21 = vld [vmem:[%s0] sm:$0xf]
    %v22 = vld [vmem:[%s1] sm:$0xff]
    %v23 = vld [vmem:[%s1 + $0x8] sm:$0xff]
    %v24 = vld [vmem:[%s1 + $0x10] sm:$0xff]
    %v25 = vld [vmem:[%s1 + $0x18] sm:$0xff]
    %v26 = vld [vmem:[%s1 + $0x20] sm:$0xff]
    %v27 = vld [vmem:[%s1 + $0x28] sm:$0xff]
    %v28 = vld [vmem:[%s1 + $0x30] sm:$0xff]
    %v29 = vld [vmem:[%s1 + $0x38] sm:$0xff]
    %v30 = vld [vmem:[%s1 + $0x40] sm:$0xff]
    %v31 = vld [vmem:[%s1 + $0x48] sm:$0xff]
    %v32 = vld [vmem:[%s1 + $0x50] sm:$0xff]
    %v33 = vld [vmem:[%s1 + $0x58] sm:$0xff]
    %v34 = vld [vmem:[%s1 + $0x60] sm:$0xff]
    %v35 = vld [vmem:[%s1 + $0x68] sm:$0xff]
    %v36 = vld [vmem:[%s1 + $0x70] sm:$0xff]
    %v37 = vld [vmem:[%s1 + $0x78] sm:$0xff]
    %v38 = vld [vmem:[%s2] sm:$0xf]
    %v39 = vand.u32 %v37, 4294901760
    %40 = vmatpush.msra.mxu0 %v39
    %v41 = vand.u32 %v36, 4294901760
    %42 = vmatpush.msra.mxu0 %v41
    %v43 = vand.u32 %v35, 4294901760
    %44 = vmatpush.msra.mxu0 %v43
    %v45 = vand.u32 %v34, 4294901760
    %46 = vmatpush.msra.mxu0 %v45
    %v47 = vand.u32 %v33, 4294901760
    %48 = vmatpush.msra.mxu0 %v47
    %v49 = vand.u32 %v32, 4294901760
    %50 = vmatpush.msra.mxu0 %v49
    %v51 = vand.u32 %v31, 4294901760
    %52 = vmatpush.msra.mxu0 %v51
    %v53 = vand.u32 %v30, 4294901760
    %54 = vmatpush.msra.mxu0 %v53
    %v55 = vand.u32 %v29, 4294901760
    %56 = vmatpush.msra.mxu0 %v55
    %v57 = vand.u32 %v28, 4294901760
    %58 = vmatpush.msra.mxu0 %v57
    %v59 = vand.u32 %v27, 4294901760
    %60 = vmatpush.msra.mxu0 %v59
    %v61 = vand.u32 %v26, 4294901760
    %62 = vmatpush.msra.mxu0 %v61
    %v63 = vand.u32 %v25, 4294901760
    %64 = vmatpush.msra.mxu0 %v63
    %v65 = vand.u32 %v24, 4294901760
    %66 = vmatpush.msra.mxu0 %v65
    %v67 = vand.u32 %v23, 4294901760
    %68 = vmatpush.msra.mxu0 %v67
    %v69 = vand.u32 %v22, 4294901760
    %70 = vmatpush.msra.mxu0 %v69
    %v71 = vand.u32 %v21, 4294901760
    %v72 = vsub.f32 %v21, %v71
    %v73 = vand.u32 %v72, 4294901760
    %v74 = vsub.f32 %v72, %v73
    %v75 = vand.u32 %v74, 4294901760
    %76 = vmatmul.f32.gmra.mxu0 %v75
    %v77 = vpop.f32.mrf.mxu0
    %v78 = vadd.f32 0.0, %v77
    %79 = vdwg.mxu0
    %v80 = vand.u32 %v37, 4294901760
    %v81 = vsub.f32 %v37, %v80
    %v82 = vand.u32 %v81, 4294901760
    %v83 = vsub.f32 %v81, %v82
    %v84 = vand.u32 %v83, 4294901760
    %85 = vmatpush.msra.mxu0 %v84
    %v86 = vand.u32 %v36, 4294901760
    %v87 = vsub.f32 %v36, %v86
    %v88 = vand.u32 %v87, 4294901760
    %v89 = vsub.f32 %v87, %v88
    %v90 = vand.u32 %v89, 4294901760
    %91 = vmatpush.msra.mxu0 %v90
    %v92 = vand.u32 %v35, 4294901760
    %v93 = vsub.f32 %v35, %v92
    %v94 = vand.u32 %v93, 4294901760
    %v95 = vsub.f32 %v93, %v94
    %v96 = vand.u32 %v95, 4294901760
    %97 = vmatpush.msra.mxu0 %v96
    %v98 = vand.u32 %v34, 4294901760
    %v99 = vsub.f32 %v34, %v98
    %v100 = vand.u32 %v99, 4294901760
    %v101 = vsub.f32 %v99, %v100
    %v102 = vand.u32 %v101, 4294901760
    %103 = vmatpush.msra.mxu0 %v102
    %v104 = vand.u32 %v33, 4294901760
    %v105 = vsub.f32 %v33, %v104
    %v106 = vand.u32 %v105, 4294901760
    %v107 = vsub.f32 %v105, %v106
    %v108 = vand.u32 %v107, 4294901760
    %109 = vmatpush.msra.mxu0 %v108
    %v110 = vand.u32 %v32, 4294901760
    %v111 = vsub.f32 %v32, %v110
    %v112 = vand.u32 %v111, 4294901760
    %v113 = vsub.f32 %v111, %v112
    %v114 = vand.u32 %v113, 4294901760
    %115 = vmatpush.msra.mxu0 %v114
    %v116 = vand.u32 %v31, 4294901760
    %v117 = vsub.f32 %v31, %v116
    %v118 = vand.u32 %v117, 4294901760
    %v119 = vsub.f32 %v117, %v118
    %v120 = vand.u32 %v119, 4294901760
    %121 = vmatpush.msra.mxu0 %v120
    %v122 = vand.u32 %v30, 4294901760
    %v123 = vsub.f32 %v30, %v122
    %v124 = vand.u32 %v123, 4294901760
    %v125 = vsub.f32 %v123, %v124
    %v126 = vand.u32 %v125, 4294901760
    %127 = vmatpush.msra.mxu0 %v126
    %v128 = vand.u32 %v29, 4294901760
    %v129 = vsub.f32 %v29, %v128
    %v130 = vand.u32 %v129, 4294901760
    %v131 = vsub.f32 %v129, %v130
    %v132 = vand.u32 %v131, 4294901760
    %133 = vmatpush.msra.mxu0 %v132
    %v134 = vand.u32 %v28, 4294901760
    %v135 = vsub.f32 %v28, %v134
    %v136 = vand.u32 %v135, 4294901760
    %v137 = vsub.f32 %v135, %v136
    %v138 = vand.u32 %v137, 4294901760
    %139 = vmatpush.msra.mxu0 %v138
    %v140 = vand.u32 %v27, 4294901760
    %v141 = vsub.f32 %v27, %v140
    %v142 = vand.u32 %v141, 4294901760
    %v143 = vsub.f32 %v141, %v142
    %v144 = vand.u32 %v143, 4294901760
    %145 = vmatpush.msra.mxu0 %v144
    %v146 = vand.u32 %v26, 4294901760
    %v147 = vsub.f32 %v26, %v146
    %v148 = vand.u32 %v147, 4294901760
    %v149 = vsub.f32 %v147, %v148
    %v150 = vand.u32 %v149, 4294901760
    %151 = vmatpush.msra.mxu0 %v150
    %v152 = vand.u32 %v25, 4294901760
    %v153 = vsub.f32 %v25, %v152
    %v154 = vand.u32 %v153, 4294901760
    %v155 = vsub.f32 %v153, %v154
    %v156 = vand.u32 %v155, 4294901760
    %157 = vmatpush.msra.mxu0 %v156
    %v158 = vand.u32 %v24, 4294901760
    %v159 = vsub.f32 %v24, %v158
    %v160 = vand.u32 %v159, 4294901760
    %v161 = vsub.f32 %v159, %v160
    %v162 = vand.u32 %v161, 4294901760
    %163 = vmatpush.msra.mxu0 %v162
    %v164 = vand.u32 %v23, 4294901760
    %v165 = vsub.f32 %v23, %v164
    %v166 = vand.u32 %v165, 4294901760
    %v167 = vsub.f32 %v165, %v166
    %v168 = vand.u32 %v167, 4294901760
    %169 = vmatpush.msra.mxu0 %v168
    %v170 = vand.u32 %v22, 4294901760
    %v171 = vsub.f32 %v22, %v170
    %v172 = vand.u32 %v171, 4294901760
    %v173 = vsub.f32 %v171, %v172
    %v174 = vand.u32 %v173, 4294901760
    %175 = vmatpush.msra.mxu0 %v174
    %v176 = vand.u32 %v21, 4294901760
    %177 = vmatmul.f32.gmra.mxu0 %v176
    %v178 = vpop.f32.mrf.mxu0
    %v179 = vadd.f32 %v78, %v178
    %180 = vdwg.mxu0
    %v181 = vand.u32 %v37, 4294901760
    %v182 = vsub.f32 %v37, %v181
    %183 = vmatpush.msra.mxu0 %v182
    %v184 = vand.u32 %v36, 4294901760
    %v185 = vsub.f32 %v36, %v184
    %186 = vmatpush.msra.mxu0 %v185
    %v187 = vand.u32 %v35, 4294901760
    %v188 = vsub.f32 %v35, %v187
    %189 = vmatpush.msra.mxu0 %v188
    %v190 = vand.u32 %v34, 4294901760
    %v191 = vsub.f32 %v34, %v190
    %192 = vmatpush.msra.mxu0 %v191
    %v193 = vand.u32 %v33, 4294901760
    %v194 = vsub.f32 %v33, %v193
    %195 = vmatpush.msra.mxu0 %v194
    %v196 = vand.u32 %v32, 4294901760
    %v197 = vsub.f32 %v32, %v196
    %198 = vmatpush.msra.mxu0 %v197
    %v199 = vand.u32 %v31, 4294901760
    %v200 = vsub.f32 %v31, %v199
    %201 = vmatpush.msra.mxu0 %v200
    %v202 = vand.u32 %v30, 4294901760
    %v203 = vsub.f32 %v30, %v202
    %204 = vmatpush.msra.mxu0 %v203
    %v205 = vand.u32 %v29, 4294901760
    %v206 = vsub.f32 %v29, %v205
    %207 = vmatpush.msra.mxu0 %v206
    %v208 = vand.u32 %v28, 4294901760
    %v209 = vsub.f32 %v28, %v208
    %210 = vmatpush.msra.mxu0 %v209
    %v211 = vand.u32 %v27, 4294901760
    %v212 = vsub.f32 %v27, %v211
    %213 = vmatpush.msra.mxu0 %v212
    %v214 = vand.u32 %v26, 4294901760
    %v215 = vsub.f32 %v26, %v214
    %216 = vmatpush.msra.mxu0 %v215
    %v217 = vand.u32 %v25, 4294901760
    %v218 = vsub.f32 %v25, %v217
    %219 = vmatpush.msra.mxu0 %v218
    %v220 = vand.u32 %v24, 4294901760
    %v221 = vsub.f32 %v24, %v220
    %222 = vmatpush.msra.mxu0 %v221
    %v223 = vand.u32 %v23, 4294901760
    %v224 = vsub.f32 %v23, %v223
    %225 = vmatpush.msra.mxu0 %v224
    %v226 = vand.u32 %v22, 4294901760
    %v227 = vsub.f32 %v22, %v226
    %228 = vmatpush.msra.mxu0 %v227
    %v229 = vand.u32 %v21, 4294901760
    %v230 = vsub.f32 %v21, %v229
    %231 = vmatmul.f32.gmra.mxu0 %v230
    %v232 = vpop.f32.mrf.mxu0
    %v233 = vadd.f32 %v179, %v232
    %234 = vdwg.mxu0
    %v235 = vand.u32 %v37, 4294901760
    %236 = vmatpush.msra.mxu0 %v235
    %v237 = vand.u32 %v36, 4294901760
    %238 = vmatpush.msra.mxu0 %v237
    %v239 = vand.u32 %v35, 4294901760
    %240 = vmatpush.msra.mxu0 %v239
    %v241 = vand.u32 %v34, 4294901760
    %242 = vmatpush.msra.mxu0 %v241
    %v243 = vand.u32 %v33, 4294901760
    %244 = vmatpush.msra.mxu0 %v243
    %v245 = vand.u32 %v32, 4294901760
    %246 = vmatpush.msra.mxu0 %v245
    %v247 = vand.u32 %v31, 4294901760
    %248 = vmatpush.msra.mxu0 %v247
    %v249 = vand.u32 %v30, 4294901760
    %250 = vmatpush.msra.mxu0 %v249
    %v251 = vand.u32 %v29, 4294901760
    %252 = vmatpush.msra.mxu0 %v251
    %v253 = vand.u32 %v28, 4294901760
    %254 = vmatpush.msra.mxu0 %v253
    %v255 = vand.u32 %v27, 4294901760
    %256 = vmatpush.msra.mxu0 %v255
    %v257 = vand.u32 %v26, 4294901760
    %258 = vmatpush.msra.mxu0 %v257
    %v259 = vand.u32 %v25, 4294901760
    %260 = vmatpush.msra.mxu0 %v259
    %v261 = vand.u32 %v24, 4294901760
    %262 = vmatpush.msra.mxu0 %v261
    %v263 = vand.u32 %v23, 4294901760
    %264 = vmatpush.msra.mxu0 %v263
    %v265 = vand.u32 %v22, 4294901760
    %266 = vmatpush.msra.mxu0 %v265
    %v267 = vand.u32 %v21, 4294901760
    %v268 = vsub.f32 %v21, %v267
    %v269 = vand.u32 %v268, 4294901760
    %270 = vmatmul.f32.gmra.mxu0 %v269
    %v271 = vpop.f32.mrf.mxu0
    %v272 = vadd.f32 %v233, %v271
    %273 = vdwg.mxu0
    %v274 = vand.u32 %v37, 4294901760
    %v275 = vsub.f32 %v37, %v274
    %v276 = vand.u32 %v275, 4294901760
    %277 = vmatpush.msra.mxu0 %v276
    %v278 = vand.u32 %v36, 4294901760
    %v279 = vsub.f32 %v36, %v278
    %v280 = vand.u32 %v279, 4294901760
    %281 = vmatpush.msra.mxu0 %v280
    %v282 = vand.u32 %v35, 4294901760
    %v283 = vsub.f32 %v35, %v282
    %v284 = vand.u32 %v283, 4294901760
    %285 = vmatpush.msra.mxu0 %v284
    %v286 = vand.u32 %v34, 4294901760
    %v287 = vsub.f32 %v34, %v286
    %v288 = vand.u32 %v287, 4294901760
    %289 = vmatpush.msra.mxu0 %v288
    %v290 = vand.u32 %v33, 4294901760
    %v291 = vsub.f32 %v33, %v290
    %v292 = vand.u32 %v291, 4294901760
    %293 = vmatpush.msra.mxu0 %v292
    %v294 = vand.u32 %v32, 4294901760
    %v295 = vsub.f32 %v32, %v294
    %v296 = vand.u32 %v295, 4294901760
    %297 = vmatpush.msra.mxu0 %v296
    %v298 = vand.u32 %v31, 4294901760
    %v299 = vsub.f32 %v31, %v298
    %v300 = vand.u32 %v299, 4294901760
    %301 = vmatpush.msra.mxu0 %v300
    %v302 = vand.u32 %v30, 4294901760
    %v303 = vsub.f32 %v30, %v302
    %v304 = vand.u32 %v303, 4294901760
    %305 = vmatpush.msra.mxu0 %v304
    %v306 = vand.u32 %v29, 4294901760
    %v307 = vsub.f32 %v29, %v306
    %v308 = vand.u32 %v307, 4294901760
    %309 = vmatpush.msra.mxu0 %v308
    %v310 = vand.u32 %v28, 4294901760
    %v311 = vsub.f32 %v28, %v310
    %v312 = vand.u32 %v311, 4294901760
    %313 = vmatpush.msra.mxu0 %v312
    %v314 = vand.u32 %v27, 4294901760
    %v315 = vsub.f32 %v27, %v314
    %v316 = vand.u32 %v315, 4294901760
    %317 = vmatpush.msra.mxu0 %v316
    %v318 = vand.u32 %v26, 4294901760
    %v319 = vsub.f32 %v26, %v318
    %v320 = vand.u32 %v319, 4294901760
    %321 = vmatpush.msra.mxu0 %v320
    %v322 = vand.u32 %v25, 4294901760
    %v323 = vsub.f32 %v25, %v322
    %v324 = vand.u32 %v323, 4294901760
    %325 = vmatpush.msra.mxu0 %v324
    %v326 = vand.u32 %v24, 4294901760
    %v327 = vsub.f32 %v24, %v326
    %v328 = vand.u32 %v327, 4294901760
    %329 = vmatpush.msra.mxu0 %v328
    %v330 = vand.u32 %v23, 4294901760
    %v331 = vsub.f32 %v23, %v330
    %v332 = vand.u32 %v331, 4294901760
    %333 = vmatpush.msra.mxu0 %v332
    %v334 = vand.u32 %v22, 4294901760
    %v335 = vsub.f32 %v22, %v334
    %v336 = vand.u32 %v335, 4294901760
    %337 = vmatpush.msra.mxu0 %v336
    %v338 = vand.u32 %v21, 4294901760
    %339 = vmatmul.f32.gmra.mxu0 %v338
    %v340 = vpop.f32.mrf.mxu0
    %v341 = vadd.f32 %v272, %v340
    %342 = vdwg.mxu0
    %v343 = vand.u32 %v37, 4294901760
    %344 = vmatpush.msra.mxu0 %v343
    %v345 = vand.u32 %v36, 4294901760
    %346 = vmatpush.msra.mxu0 %v345
    %v347 = vand.u32 %v35, 4294901760
    %348 = vmatpush.msra.mxu0 %v347
    %v349 = vand.u32 %v34, 4294901760
    %350 = vmatpush.msra.mxu0 %v349
    %v351 = vand.u32 %v33, 4294901760
    %352 = vmatpush.msra.mxu0 %v351
    %v353 = vand.u32 %v32, 4294901760
    %354 = vmatpush.msra.mxu0 %v353
    %v355 = vand.u32 %v31, 4294901760
    %356 = vmatpush.msra.mxu0 %v355
    %v357 = vand.u32 %v30, 4294901760
    %358 = vmatpush.msra.mxu0 %v357
    %v359 = vand.u32 %v29, 4294901760
    %360 = vmatpush.msra.mxu0 %v359
    %v361 = vand.u32 %v28, 4294901760
    %362 = vmatpush.msra.mxu0 %v361
    %v363 = vand.u32 %v27, 4294901760
    %364 = vmatpush.msra.mxu0 %v363
    %v365 = vand.u32 %v26, 4294901760
    %366 = vmatpush.msra.mxu0 %v365
    %v367 = vand.u32 %v25, 4294901760
    %368 = vmatpush.msra.mxu0 %v367
    %v369 = vand.u32 %v24, 4294901760
    %370 = vmatpush.msra.mxu0 %v369
    %v371 = vand.u32 %v23, 4294901760
    %372 = vmatpush.msra.mxu0 %v371
    %v373 = vand.u32 %v22, 4294901760
    %374 = vmatpush.msra.mxu0 %v373
    %v375 = vand.u32 %v21, 4294901760
    %376 = vmatmul.f32.gmra.mxu0 %v375
    %v377 = vpop.f32.mrf.mxu0
    %v378 = vadd.f32 %v341, %v377
    %379 = vdwg.mxu0
    %v380 = vtanh.pop %v378
    %381 = vmatpush.xpose.msra.mxu0 0.0
    %382 = vmatpush.xpose.msra.mxu0 0.0
    %383 = vmatpush.xpose.msra.mxu0 0.0
    %384 = vmatpush.xpose.msra.mxu0 0.0
    %385 = vmatpush.xpose.msra.mxu0 0.0
    %386 = vmatpush.xpose.msra.mxu0 0.0
    %387 = vmatpush.xpose.msra.mxu0 0.0
    %388 = vmatpush.xpose.msra.mxu0 0.0
    %389 = vmatpush.xpose.msra.mxu0 0.0
    %390 = vmatpush.xpose.msra.mxu0 0.0
    %391 = vmatpush.xpose.msra.mxu0 0.0
    %392 = vmatpush.xpose.msra.mxu0 0.0
    %393 = vmatpush.xpose.msra.mxu0 0.0
    %394 = vmatpush.xpose.msra.mxu0 0.0
    %395 = vmatpush.xpose.msra.mxu0 0.0
    %v396 = vand.u32 %v21, 4294901760
    %397 = vmatpush.xpose.msra.mxu0 %v396
    %v398 = vand.u32 %v38, 4294901760
    %v399 = vsub.f32 %v38, %v398
    %v400 = vand.u32 %v399, 4294901760
    %v401 = vsub.f32 %v399, %v400
    %v402 = vand.u32 %v401, 4294901760
    %403 = vmatmul.f32.gmra.mxu0 %v402
    %v404 = vpop.f32.mrf.mxu0
    %v405 = vadd.f32 0.0, %v404
    %406 = vdwg.mxu0
    %407 = vmatpush.xpose.msra.mxu0 0.0
    %408 = vmatpush.xpose.msra.mxu0 0.0
    %409 = vmatpush.xpose.msra.mxu0 0.0
    %410 = vmatpush.xpose.msra.mxu0 0.0
    %411 = vmatpush.xpose.msra.mxu0 0.0
    %412 = vmatpush.xpose.msra.mxu0 0.0
    %413 = vmatpush.xpose.msra.mxu0 0.0
    %414 = vmatpush.xpose.msra.mxu0 0.0
    %415 = vmatpush.xpose.msra.mxu0 0.0
    %416 = vmatpush.xpose.msra.mxu0 0.0
    %417 = vmatpush.xpose.msra.mxu0 0.0
    %418 = vmatpush.xpose.msra.mxu0 0.0
    %419 = vmatpush.xpose.msra.mxu0 0.0
    %420 = vmatpush.xpose.msra.mxu0 0.0
    %421 = vmatpush.xpose.msra.mxu0 0.0
    %v422 = vand.u32 %v21, 4294901760
    %v423 = vsub.f32 %v21, %v422
    %v424 = vand.u32 %v423, 4294901760
    %v425 = vsub.f32 %v423, %v424
    %v426 = vand.u32 %v425, 4294901760
    %427 = vmatpush.xpose.msra.mxu0 %v426
    %v428 = vand.u32 %v38, 4294901760
    %429 = vmatmul.f32.gmra.mxu0 %v428
    %v430 = vpop.f32.mrf.mxu0
    %v431 = vadd.f32 %v405, %v430
    %432 = vdwg.mxu0
    %433 = vmatpush.xpose.msra.mxu0 0.0
    %434 = vmatpush.xpose.msra.mxu0 0.0
    %435 = vmatpush.xpose.msra.mxu0 0.0
    %436 = vmatpush.xpose.msra.mxu0 0.0
    %437 = vmatpush.xpose.msra.mxu0 0.0
    %438 = vmatpush.xpose.msra.mxu0 0.0
    %439 = vmatpush.xpose.msra.mxu0 0.0
    %440 = vmatpush.xpose.msra.mxu0 0.0
    %441 = vmatpush.xpose.msra.mxu0 0.0
    %442 = vmatpush.xpose.msra.mxu0 0.0
    %443 = vmatpush.xpose.msra.mxu0 0.0
    %444 = vmatpush.xpose.msra.mxu0 0.0
    %445 = vmatpush.xpose.msra.mxu0 0.0
    %446 = vmatpush.xpose.msra.mxu0 0.0
    %447 = vmatpush.xpose.msra.mxu0 0.0
    %v448 = vand.u32 %v21, 4294901760
    %v449 = vsub.f32 %v21, %v448
    %450 = vmatpush.xpose.msra.mxu0 %v449
    %v451 = vand.u32 %v38, 4294901760
    %v452 = vsub.f32 %v38, %v451
    %453 = vmatmul.f32.gmra.mxu0 %v452
    %v454 = vpop.f32.mrf.mxu0
    %v455 = vadd.f32 %v431, %v454
    %456 = vdwg.mxu0
    %457 = vmatpush.xpose.msra.mxu0 0.0
    %458 = vmatpush.xpose.msra.mxu0 0.0
    %459 = vmatpush.xpose.msra.mxu0 0.0
    %460 = vmatpush.xpose.msra.mxu0 0.0
    %461 = vmatpush.xpose.msra.mxu0 0.0
    %462 = vmatpush.xpose.msra.mxu0 0.0
    %463 = vmatpush.xpose.msra.mxu0 0.0
    %464 = vmatpush.xpose.msra.mxu0 0.0
    %465 = vmatpush.xpose.msra.mxu0 0.0
    %466 = vmatpush.xpose.msra.mxu0 0.0
    %467 = vmatpush.xpose.msra.mxu0 0.0
    %468 = vmatpush.xpose.msra.mxu0 0.0
    %469 = vmatpush.xpose.msra.mxu0 0.0
    %470 = vmatpush.xpose.msra.mxu0 0.0
    %471 = vmatpush.xpose.msra.mxu0 0.0
    %v472 = vand.u32 %v21, 4294901760
    %473 = vmatpush.xpose.msra.mxu0 %v472
    %v474 = vand.u32 %v38, 4294901760
    %v475 = vsub.f32 %v38, %v474
    %v476 = vand.u32 %v475, 4294901760
    %477 = vmatmul.f32.gmra.mxu0 %v476
    %v478 = vpop.f32.mrf.mxu0
    %v479 = vadd.f32 %v455, %v478
    %480 = vdwg.mxu0
    %481 = vmatpush.xpose.msra.mxu0 0.0
    %482 = vmatpush.xpose.msra.mxu0 0.0
    %483 = vmatpush.xpose.msra.mxu0 0.0
    %484 = vmatpush.xpose.msra.mxu0 0.0
    %485 = vmatpush.xpose.msra.mxu0 0.0
    %486 = vmatpush.xpose.msra.mxu0 0.0
    %487 = vmatpush.xpose.msra.mxu0 0.0
    %488 = vmatpush.xpose.msra.mxu0 0.0
    %489 = vmatpush.xpose.msra.mxu0 0.0
    %490 = vmatpush.xpose.msra.mxu0 0.0
    %491 = vmatpush.xpose.msra.mxu0 0.0
    %492 = vmatpush.xpose.msra.mxu0 0.0
    %493 = vmatpush.xpose.msra.mxu0 0.0
    %494 = vmatpush.xpose.msra.mxu0 0.0
    %495 = vmatpush.xpose.msra.mxu0 0.0
    %v496 = vand.u32 %v21, 4294901760
    %v497 = vsub.f32 %v21, %v496
    %v498 = vand.u32 %v497, 4294901760
    %499 = vmatpush.xpose.msra.mxu0 %v498
    %v500 = vand.u32 %v38, 4294901760
    %501 = vmatmul.f32.gmra.mxu0 %v500
    %v502 = vpop.f32.mrf.mxu0
    %v503 = vadd.f32 %v479, %v502
    %504 = vdwg.mxu0
    %505 = vmatpush.xpose.msra.mxu0 0.0
    %506 = vmatpush.xpose.msra.mxu0 0.0
    %507 = vmatpush.xpose.msra.mxu0 0.0
    %508 = vmatpush.xpose.msra.mxu0 0.0
    %509 = vmatpush.xpose.msra.mxu0 0.0
    %510 = vmatpush.xpose.msra.mxu0 0.0
    %511 = vmatpush.xpose.msra.mxu0 0.0
    %512 = vmatpush.xpose.msra.mxu0 0.0
    %513 = vmatpush.xpose.msra.mxu0 0.0
    %514 = vmatpush.xpose.msra.mxu0 0.0
    %515 = vmatpush.xpose.msra.mxu0 0.0
    %516 = vmatpush.xpose.msra.mxu0 0.0
    %517 = vmatpush.xpose.msra.mxu0 0.0
    %518 = vmatpush.xpose.msra.mxu0 0.0
    %519 = vmatpush.xpose.msra.mxu0 0.0
    %v520 = vand.u32 %v21, 4294901760
    %521 = vmatpush.xpose.msra.mxu0 %v520
    %v522 = vand.u32 %v38, 4294901760
    %523 = vmatmul.f32.gmra.mxu0 %v522
    %v524 = vpop.f32.mrf.mxu0
    %v525 = vadd.f32 %v503, %v524
    %526 = vdwg.mxu0
    %v527 = vtanh.pop %v525
    %vm528 = vcmask 27648
    %529 = vst.msk [vmem:[#allocation2] sm:$0xf] %vm528, %v527
    %v530 = vld [vmem:[%s3] sm:$0xf]
    %vm531 = vcmask 31744
    %v533 = vsel %vm531, %v380, 0
    %vm535 = vcmask 1043456
    %v537 = vsel %vm535, %v530, 0
    %539 = vmatpush.msra.mxu0 0.0
    %540 = vmatpush.msra.mxu0 0.0
    %541 = vmatpush.msra.mxu0 0.0
    %542 = vmatpush.msra.mxu0 0.0
    %543 = vmatpush.msra.mxu0 0.0
    %544 = vmatpush.msra.mxu0 0.0
    %545 = vmatpush.msra.mxu0 0.0
    %546 = vmatpush.msra.mxu0 0.0
    %547 = vmatpush.msra.mxu0 0.0
    %548 = vmatpush.msra.mxu0 0.0
    %549 = vmatpush.msra.mxu0 0.0
    %550 = vmatpush.msra.mxu0 0.0
    %551 = vmatpush.msra.mxu0 0.0
    %552 = vmatpush.msra.mxu0 0.0
    %553 = vmatpush.msra.mxu0 0.0
    %v554 = vand.u32 %v537, 4294901760
    %555 = vmatpush.msra.mxu0 %v554
    %v556 = vand.u32 %v533, 4294901760
    %v557 = vsub.f32 %v533, %v556
    %v558 = vand.u32 %v557, 4294901760
    %v559 = vsub.f32 %v557, %v558
    %v560 = vand.u32 %v559, 4294901760
    %561 = vmatmul.f32.gmra.mxu0 %v560
    %v562 = vpop.f32.mrf.mxu0
    %v563 = vadd.f32 0.0, %v562
    %564 = vdwg.mxu0
    %565 = vmatpush.msra.mxu0 0.0
    %566 = vmatpush.msra.mxu0 0.0
    %567 = vmatpush.msra.mxu0 0.0
    %568 = vmatpush.msra.mxu0 0.0
    %569 = vmatpush.msra.mxu0 0.0
    %570 = vmatpush.msra.mxu0 0.0
    %571 = vmatpush.msra.mxu0 0.0
    %572 = vmatpush.msra.mxu0 0.0
    %573 = vmatpush.msra.mxu0 0.0
    %574 = vmatpush.msra.mxu0 0.0
    %575 = vmatpush.msra.mxu0 0.0
    %576 = vmatpush.msra.mxu0 0.0
    %577 = vmatpush.msra.mxu0 0.0
    %578 = vmatpush.msra.mxu0 0.0
    %579 = vmatpush.msra.mxu0 0.0
    %v580 = vand.u32 %v537, 4294901760
    %v581 = vsub.f32 %v537, %v580
    %v582 = vand.u32 %v581, 4294901760
    %v583 = vsub.f32 %v581, %v582
    %v584 = vand.u32 %v583, 4294901760
    %585 = vmatpush.msra.mxu0 %v584
    %v586 = vand.u32 %v533, 4294901760
    %587 = vmatmul.f32.gmra.mxu0 %v586
    %v588 = vpop.f32.mrf.mxu0
    %v589 = vadd.f32 %v563, %v588
    %590 = vdwg.mxu0
    %591 = vmatpush.msra.mxu0 0.0
    %592 = vmatpush.msra.mxu0 0.0
    %593 = vmatpush.msra.mxu0 0.0
    %594 = vmatpush.msra.mxu0 0.0
    %595 = vmatpush.msra.mxu0 0.0
    %596 = vmatpush.msra.mxu0 0.0
    %597 = vmatpush.msra.mxu0 0.0
    %598 = vmatpush.msra.mxu0 0.0
    %599 = vmatpush.msra.mxu0 0.0
    %600 = vmatpush.msra.mxu0 0.0
    %601 = vmatpush.msra.mxu0 0.0
    %602 = vmatpush.msra.mxu0 0.0
    %603 = vmatpush.msra.mxu0 0.0
    %604 = vmatpush.msra.mxu0 0.0
    %605 = vmatpush.msra.mxu0 0.0
    %v606 = vand.u32 %v537, 4294901760
    %v607 = vsub.f32 %v537, %v606
    %608 = vmatpush.msra.mxu0 %v607
    %v609 = vand.u32 %v533, 4294901760
    %v610 = vsub.f32 %v533, %v609
    %611 = vmatmul.f32.gmra.mxu0 %v610
    %v612 = vpop.f32.mrf.mxu0
    %v613 = vadd.f32 %v589, %v612
    %614 = vdwg.mxu0
    %615 = vmatpush.msra.mxu0 0.0
    %616 = vmatpush.msra.mxu0 0.0
    %617 = vmatpush.msra.mxu0 0.0
    %618 = vmatpush.msra.mxu0 0.0
    %619 = vmatpush.msra.mxu0 0.0
    %620 = vmatpush.msra.mxu0 0.0
    %621 = vmatpush.msra.mxu0 0.0
    %622 = vmatpush.msra.mxu0 0.0
    %623 = vmatpush.msra.mxu0 0.0
    %624 = vmatpush.msra.mxu0 0.0
    %625 = vmatpush.msra.mxu0 0.0
    %626 = vmatpush.msra.mxu0 0.0
    %627 = vmatpush.msra.mxu0 0.0
    %628 = vmatpush.msra.mxu0 0.0
    %629 = vmatpush.msra.mxu0 0.0
    %v630 = vand.u32 %v537, 4294901760
    %631 = vmatpush.msra.mxu0 %v630
    %v632 = vand.u32 %v533, 4294901760
    %v633 = vsub.f32 %v533, %v632
    %v634 = vand.u32 %v633, 4294901760
    %635 = vmatmul.f32.gmra.mxu0 %v634
    %v636 = vpop.f32.mrf.mxu0
    %v637 = vadd.f32 %v613, %v636
    %638 = vdwg.mxu0
    %639 = vmatpush.msra.mxu0 0.0
    %640 = vmatpush.msra.mxu0 0.0
    %641 = vmatpush.msra.mxu0 0.0
    %642 = vmatpush.msra.mxu0 0.0
    %643 = vmatpush.msra.mxu0 0.0
    %644 = vmatpush.msra.mxu0 0.0
    %645 = vmatpush.msra.mxu0 0.0
    %646 = vmatpush.msra.mxu0 0.0
    %647 = vmatpush.msra.mxu0 0.0
    %648 = vmatpush.msra.mxu0 0.0
    %649 = vmatpush.msra.mxu0 0.0
    %650 = vmatpush.msra.mxu0 0.0
    %651 = vmatpush.msra.mxu0 0.0
    %652 = vmatpush.msra.mxu0 0.0
    %653 = vmatpush.msra.mxu0 0.0
    %v654 = vand.u32 %v537, 4294901760
    %v655 = vsub.f32 %v537, %v654
    %v656 = vand.u32 %v655, 4294901760
    %657 = vmatpush.msra.mxu0 %v656
    %v658 = vand.u32 %v533, 4294901760
    %659 = vmatmul.f32.gmra.mxu0 %v658
    %v660 = vpop.f32.mrf.mxu0
    %v661 = vadd.f32 %v637, %v660
    %662 = vdwg.mxu0
    %663 = vmatpush.msra.mxu0 0.0
    %664 = vmatpush.msra.mxu0 0.0
    %665 = vmatpush.msra.mxu0 0.0
    %666 = vmatpush.msra.mxu0 0.0
    %667 = vmatpush.msra.mxu0 0.0
    %668 = vmatpush.msra.mxu0 0.0
    %669 = vmatpush.msra.mxu0 0.0
    %670 = vmatpush.msra.mxu0 0.0
    %671 = vmatpush.msra.mxu0 0.0
    %672 = vmatpush.msra.mxu0 0.0
    %673 = vmatpush.msra.mxu0 0.0
    %674 = vmatpush.msra.mxu0 0.0
    %675 = vmatpush.msra.mxu0 0.0
    %676 = vmatpush.msra.mxu0 0.0
    %677 = vmatpush.msra.mxu0 0.0
    %v678 = vand.u32 %v537, 4294901760
    %679 = vmatpush.msra.mxu0 %v678
    %v680 = vand.u32 %v533, 4294901760
    %681 = vmatmul.f32.gmra.mxu0 %v680
    %v682 = vpop.f32.mrf.mxu0
    %v683 = vadd.f32 %v661, %v682
    %684 = vdwg.mxu0
    %v685 = vmul.f32 %v21, %v683
    %686 = vst [vmem:[#allocation4] sm:$0xf] %v685
    // Predicated region
    $region18: #{tpu_custom_call.1} parent=1 // pred_check
      _
    $region19: #{tpu_custom_call.1} parent=1 // pred_check_branch
      %688 = sbr.rel (0) target = $region21
    $region20: #{tpu_custom_call.1} parent=1 // pred_region
      %690 = vsyncadd [#allocation3], 0
      %s692 = sshll.u32 [#allocation2], 4
      %s693 = int_to_ptr.vmem [resolvable:$true] %s692
      %s694 = sshll.u32 %s4, 4
      %s695 = int_to_ptr.hbm [resolvable:$true] %s694
      %697 = dma.vmem_to_hbm [thread:$0]  %s693, 64, %s695, [#allocation3]
    $region21: #{tpu_custom_call.1} parent=1 // pred_fallthru
      _
    // Predicated region
    $region22: #{tpu_custom_call.1} parent=1 // pred_check
      _
    $region23: #{tpu_custom_call.1} parent=1 // pred_check_branch
      %699 = sbr.rel (0) target = $region25
    $region24: #{tpu_custom_call.1} parent=1 // pred_region
      %701 = vsyncadd [#allocation5], 0
      %s703 = sshll.u32 [#allocation4], 4
      %s704 = int_to_ptr.vmem [resolvable:$true] %s703
      %s705 = sshll.u32 %s5, 4
      %s706 = int_to_ptr.hbm [resolvable:$true] %s705
      %708 = dma.vmem_to_hbm [thread:$0]  %s704, 64, %s706, [#allocation5]
    $region25: #{tpu_custom_call.1} parent=1 // pred_fallthru
      _
    // Predicated region
    $region26: #{tpu_custom_call.1} parent=1 // pred_check
      _
    $region27: #{tpu_custom_call.1} parent=1 // pred_check_branch
      %710 = sbr.rel (0) target = $region29
    $region28: #{tpu_custom_call.1} parent=1 // pred_region
      %712 = dma.done [#allocation3], 64
    $region29: #{tpu_custom_call.1} parent=1 // pred_fallthru
      _
    // Predicated region
    $region30: #{tpu_custom_call.1} parent=1 // pred_check
      _
    $region31: #{tpu_custom_call.1} parent=1 // pred_check_branch
      %714 = sbr.rel (0) target = $region33
    $region32: #{tpu_custom_call.1} parent=1 // pred_region
      %716 = dma.done [#allocation5], 64
    $region33: #{tpu_custom_call.1} parent=1 // pred_fallthru
      _
    %717 = vsyncpa [#allocation3], 1
    %718 = vsyncpa [#allocation5], 1

</llo_original>
